<compile_context>
chip_gen: v7x
topology: tpu7x:2x2x1
jax: 0.10.0
libtpu: 0.0.40
codegen_flags: <defaults>
</compile_context>

<pallas_src>
import functools

import jax
import jax.numpy as jnp
from jax.experimental import pallas as pl
from jax.experimental.pallas import tpu as pltpu

_LANES = 128
_MAX_TILE_ROWS = 4096          # (4096, 128) f32 tile = 2 MiB / array / buffer
_MIN_CHUNKS = 4                # keep grid splittable across v7x's 2 TensorCores
_RESIDENT_MAX_ELEMS = 2 << 20  # ~2M f32 elems -> ~24 MiB resident, safe on all gens
_VMEM_LIMIT = 48 << 20


def _modulation(t, p, gamma):
    """|t - p| ** gamma with cheap paths for integer gamma (default gamma=2)."""
    d = t - p
    g = float(gamma)
    if g == 2.0:
        return d * d                                   # even power: abs redundant
    if g.is_integer() and int(g) % 2 == 0:
        return jax.lax.integer_pow(d, int(g))
    if g.is_integer():
        return jax.lax.integer_pow(jnp.abs(d), int(g))
    return jnp.power(jnp.abs(d), jnp.float32(g))


def _bce_and_sigmoid(x, t):
    """Stable BCEWithLogits + sigmoid, sharing exp(-|x|)."""
    e = jnp.exp(-jnp.abs(x))
    bce = jnp.maximum(x, 0.0) - x * t + jnp.log1p(e)
    inv = pl.reciprocal(1.0 + e, approx=False)         # EUP, not a VALU divide
    p = jnp.where(x >= 0.0, inv, e * inv)               # sigmoid(x)
    return bce, p


def _focal_resident_kernel(x_ref, t_ref, out_ref, *, gamma, alpha, n_valid,
                           mask_tail):
    """Whole problem in VMEM: BCE mean + scale + modulation in one invocation."""
    x = x_ref[...].astype(jnp.float32)
    t = t_ref[...].astype(jnp.float32)
    bce, p = _bce_and_sigmoid(x, t)

    if mask_tail:  # zero the (< 128) zero-padded tail's BCE contribution
        row = jax.lax.broadcasted_iota(jnp.int32, x.shape, 0)
        lane = jax.lax.broadcasted_iota(jnp.int32, x.shape, 1)
        bce = jnp.where(row * _LANES + lane < n_valid, bce, 0.0)

    total = jnp.sum(jnp.sum(bce, axis=1, keepdims=True), axis=0, keepdims=True)
    scale = total * jnp.float32(float(alpha) / n_valid)           # (1, 1)
    out_ref[...] = (scale * _modulation(t, p, gamma)).astype(out_ref.dtype)


def _focal_stream_kernel(x_ref, t_ref, mod_ref, psum_ref, *, gamma, last_valid,
                         mask_last):
    """Streaming pass: per-chunk per-lane BCE partials + elementwise modulation."""
    x = x_ref[...].astype(jnp.float32)
    t = t_ref[...].astype(jnp.float32)
    bce, p = _bce_and_sigmoid(x, t)

    if mask_last:
        # Only the last chunk carries padded / clipped-garbage elements; do the
        # (tile-local, int32-safe) masking only there.
        is_last = pl.program_id(0) == pl.num_programs(0) - 1

        @pl.when(is_last)
        def _():
            row = jax.lax.broadcasted_iota(jnp.int32, x.shape, 0)
            lane = jax.lax.broadcasted_iota(jnp.int32, x.shape, 1)
            masked = jnp.where(row * _LANES + lane < last_valid, bce, 0.0)
            psum_ref[...] = jnp.sum(masked, axis=0).reshape(1, 1, _LANES)

        @pl.when(jnp.logical_not(is_last))
        def _():
            psum_ref[...] = jnp.sum(bce, axis=0).reshape(1, 1, _LANES)
    else:
        psum_ref[...] = jnp.sum(bce, axis=0).reshape(1, 1, _LANES)

    mod_ref[...] = _modulation(t, p, gamma).astype(mod_ref.dtype)


def focal_loss(x, t, gamma=2.0, alpha=1.0, reduction="mean",
               max_resident_elems=_RESIDENT_MAX_ELEMS):
    """Pallas implementation of FocalLoss.forward (default reduction='mean')."""
    if reduction != "mean":
        # TODO(synk): 'none'/'sum' reductions of the inner BCE not wired up
        # (the GGHL module uses the default 'mean').
        raise NotImplementedError("only reduction='mean' is implemented")

    orig_shape = x.shape
    n = x.size
    rows = pl.cdiv(n, _LANES)
    lane_pad = rows * _LANES - n          # < 128; nonzero only if n % 128 != 0

    if lane_pad == 0:
        xf = x.reshape(rows, _LANES)       # free reshape, no copy
        tf = t.reshape(rows, _LANES)
    else:
        xf = jnp.pad(x.reshape(-1), (0, lane_pad)).reshape(rows, _LANES)
        tf = jnp.pad(t.reshape(-1), (0, lane_pad)).reshape(rows, _LANES)

    if n <= max_resident_elems:
        # --- VMEM-resident single-invocation path -------------------------
        kernel = functools.partial(
            _focal_resident_kernel, gamma=gamma, alpha=alpha, n_valid=n,
            mask_tail=(lane_pad > 0))
        out = pl.pallas_call(
            kernel,
            out_shape=jax.ShapeDtypeStruct((rows, _LANES), jnp.float32),
            compiler_params=pltpu.CompilerParams(vmem_limit_bytes=_VMEM_LIMIT),
        )(xf, tf)
    else:
        # --- Streaming path (large n) --------------------------------------
        tile_rows = min(_MAX_TILE_ROWS,
                        ((pl.cdiv(rows, _MIN_CHUNKS) + 7) // 8) * 8)
        num_chunks = pl.cdiv(rows, tile_rows)
        last_valid = n - (num_chunks - 1) * tile_rows * _LANES  # tile-local count
        mask_last = last_valid < tile_rows * _LANES

        kernel = functools.partial(
            _focal_stream_kernel, gamma=gamma, last_valid=last_valid,
            mask_last=mask_last)
        mod, psum = pl.pallas_call(
            kernel,
            out_shape=(
                jax.ShapeDtypeStruct((rows, _LANES), jnp.float32),
                jax.ShapeDtypeStruct((num_chunks, 1, _LANES), jnp.float32),
            ),
            grid=(num_chunks,),
            in_specs=[
                pl.BlockSpec((tile_rows, _LANES), lambda i: (i, 0)),
                pl.BlockSpec((tile_rows, _LANES), lambda i: (i, 0)),
            ],
            out_specs=(
                pl.BlockSpec((tile_rows, _LANES), lambda i: (i, 0)),
                pl.BlockSpec((1, 1, _LANES), lambda i: (i, 0, 0)),
            ),
            compiler_params=pltpu.CompilerParams(
                dimension_semantics=("parallel",),
                vmem_limit_bytes=_VMEM_LIMIT),
        )(xf, tf)

        # Scalar (mean * alpha) applied in plain JAX; XLA fuses it with the
        # slice/reshape epilogue.
        scale = jnp.sum(psum, dtype=jnp.float32) * jnp.float32(float(alpha) / n)
        out = scale * mod

    if lane_pad:
        return out.reshape(-1)[:n].reshape(orig_shape)
    return out.reshape(orig_shape)


def _focal_loss_ref(x, t, gamma=2.0, alpha=1.0):
    x = x.astype(jnp.float32)
    t = t.astype(jnp.float32)
    bce = jnp.maximum(x, 0.0) - x * t + jnp.log1p(jnp.exp(-jnp.abs(x)))
    mean = jnp.mean(bce)
    return mean * alpha * jnp.abs(t - jax.nn.sigmoid(x)) ** gamma


if __name__ == "__main__":
    key = jax.random.PRNGKey(0)
    kx, kt = jax.random.split(key)

    # 1) NCHW logits + soft targets (matches GGHL usage) -> resident path.
    x = jax.random.normal(kx, (2, 4, 16, 16), dtype=jnp.float32) * 2.0
    t = jax.random.uniform(kt, (2, 4, 16, 16), dtype=jnp.float32)
    out = jax.block_until_ready(focal_loss(x, t, gamma=2.0, alpha=1.0))
    ref = jax.block_until_ready(_focal_loss_ref(x, t, gamma=2.0, alpha=1.0))
    assert out.shape == x.shape and out.dtype == jnp.float32
    assert jnp.allclose(out, ref, rtol=1e-5, atol=1e-6), float(jnp.max(jnp.abs(out - ref)))

    # 2) Ragged element count (n % 128 != 0) -> resident path with tail mask.
    kx2, kt2 = jax.random.split(kt)
    x2 = jax.random.normal(kx2, (3, 5, 7, 9), dtype=jnp.float32)
    t2 = jax.random.uniform(kt2, (3, 5, 7, 9), dtype=jnp.float32)
    out2 = jax.block_until_ready(focal_loss(x2, t2))
    ref2 = jax.block_until_ready(_focal_loss_ref(x2, t2))
    assert jnp.allclose(out2, ref2, rtol=1e-5, atol=1e-6), float(jnp.max(jnp.abs(out2 - ref2)))

    # 3) Force the streaming path (multi-chunk, exact tiles).
    out3 = jax.block_until_ready(focal_loss(x, t, max_resident_elems=0))
    assert jnp.allclose(out3, ref, rtol=1e-5, atol=1e-6), float(jnp.max(jnp.abs(out3 - ref)))

    # 4) Force the streaming path with a clipped (ragged) last block.
    kx4, kt4 = jax.random.split(kt2)
    x4 = jax.random.normal(kx4, (4, 8, 60, 100), dtype=jnp.float32) * 1.5
    t4 = jax.random.uniform(kt4, (4, 8, 60, 100), dtype=jnp.float32)
    out4 = jax.block_until_ready(focal_loss(x4, t4, max_resident_elems=0))
    ref4 = jax.block_until_ready(_focal_loss_ref(x4, t4))
    assert jnp.allclose(out4, ref4, rtol=1e-5, atol=1e-6), float(jnp.max(jnp.abs(out4 - ref4)))

    # 5) bf16 inputs pass through unconverted (upcast happens in-kernel).
    xb = x.astype(jnp.bfloat16)
    tb = t.astype(jnp.bfloat16)
    outb = jax.block_until_ready(focal_loss(xb, tb))
    refb = jax.block_until_ready(_focal_loss_ref(xb, tb))
    assert outb.dtype == jnp.float32
    assert jnp.allclose(outb, refb, rtol=1e-5, atol=1e-6), float(jnp.max(jnp.abs(outb - refb)))

    print("KERNEL_OK")
</pallas_src>

<mosaic_0001>
module attributes {stable_mosaic.version = 11 : i64} {
  func.func @_focal_resident_kernel(%arg0: memref<16x128xf32, #tpu.memory_space<vmem>>, %arg1: memref<16x128xf32, #tpu.memory_space<vmem>>, %arg2: memref<16x128xf32, #tpu.memory_space<vmem>>) attributes {dimension_semantics = [], scalar_prefetch = 0 : i64, scratch_operands = 0 : i64, tpu.core_type = #tpu.core_type<tc>} {
    %c0 = arith.constant 0 : index
    %c0_0 = arith.constant 0 : index
    %0 = vector.load %arg0[%c0, %c0_0] : memref<16x128xf32, #tpu.memory_space<vmem>>, vector<16x128xf32>
    %c0_1 = arith.constant 0 : index
    %c0_2 = arith.constant 0 : index
    %1 = vector.load %arg1[%c0_1, %c0_2] : memref<16x128xf32, #tpu.memory_space<vmem>>, vector<16x128xf32>
    %2 = math.absf %0 : vector<16x128xf32>
    %cst = arith.constant 0.000000e+00 : f32
    %3 = vector.broadcast %cst : f32 to vector<16x128xf32>
    %4 = arith.subf %3, %2 : vector<16x128xf32>
    %5 = math.exp %4 : vector<16x128xf32>
    %cst_3 = arith.constant 0.000000e+00 : f32
    %6 = vector.broadcast %cst_3 : f32 to vector<16x128xf32>
    %7 = arith.maximumf %0, %6 : vector<16x128xf32>
    %8 = arith.mulf %0, %1 : vector<16x128xf32>
    %9 = arith.subf %7, %8 : vector<16x128xf32>
    %10 = math.log1p %5 : vector<16x128xf32>
    %11 = arith.addf %9, %10 : vector<16x128xf32>
    %cst_4 = arith.constant 1.000000e+00 : f32
    %12 = vector.broadcast %cst_4 : f32 to vector<16x128xf32>
    %13 = arith.addf %12, %5 : vector<16x128xf32>
    %14 = tpu.reciprocal %13 : vector<16x128xf32> -> vector<16x128xf32>
    %cst_5 = arith.constant 0.000000e+00 : f32
    %15 = vector.broadcast %cst_5 : f32 to vector<16x128xf32>
    %16 = arith.cmpf oge, %0, %15 : vector<16x128xf32>
    %17 = arith.mulf %5, %14 : vector<16x128xf32>
    %18 = arith.select %16, %14, %17 : vector<16x128xi1>, vector<16x128xf32>
    %cst_6 = arith.constant dense<0.000000e+00> : vector<16xf32>
    %19 = vector.multi_reduction <add>, %11, %cst_6 [1] : vector<16x128xf32> to vector<16xf32>
    %20 = vector.shape_cast %19 : vector<16xf32> to vector<16x1xf32>
    %cst_7 = arith.constant dense<0.000000e+00> : vector<1xf32>
    %21 = vector.multi_reduction <add>, %20, %cst_7 [0] : vector<16x1xf32> to vector<1xf32>
    %22 = vector.shape_cast %21 : vector<1xf32> to vector<1x1xf32>
    %cst_8 = arith.constant 4.8828125E-4 : f32
    %23 = vector.broadcast %cst_8 : f32 to vector<1x1xf32>
    %24 = arith.mulf %22, %23 : vector<1x1xf32>
    %25 = arith.subf %1, %18 : vector<16x128xf32>
    %26 = arith.mulf %25, %25 : vector<16x128xf32>
    %27 = vector.broadcast %24 : vector<1x1xf32> to vector<16x128xf32>
    %28 = arith.mulf %27, %26 : vector<16x128xf32>
    %c0_9 = arith.constant 0 : index
    %c0_10 = arith.constant 0 : index
    %29 = vector.load %arg2[%c0_9, %c0_10] : memref<16x128xf32, #tpu.memory_space<vmem>>, vector<16x128xf32>
    tpu.vector_store %arg2[%c0_9, %c0_10], %28 {strides = array<i32>} : memref<16x128xf32, #tpu.memory_space<vmem>>, vector<16x128xf32>,
    return
  }
}

</mosaic_0001>

<llo_original>
// kernel: tpu_custom_call.1
$region0: #{tpu_custom_call.1}
  #allocation0 [shape = 'u32[]', space=smem, size = 0x4, offset = 0x4, fixed_abs, tag = 'smem constant byte address 0x4 - core index']
  #allocation1 [shape = 'u32[144,128]{1,0:T(1,128)}', space=vmem, size = 0x12000, scoped, tag = 'internal scratch']
  %s0 = inlined_call_operand.hbm [shape: f32[16,128], index: 0, kind: input, shape index: {}]
  %s1 = inlined_call_operand.hbm [shape: f32[16,128], index: 1, kind: input, shape index: {}]
  %s2 = inlined_call_operand.hbm [shape: f32[16,128], index: 2, kind: output, shape index: {}]
  %s3 = sld [smem:[#allocation0]]
  $region26: #{tpu_custom_call.1} parent=0
    _
  %s5 = ssub.s32 1, %s3
  %s6 = scalar_select 0, %s5, %s3
  $region1: #{tpu_custom_call.1} parent=0
    #allocation2 [shape = 'u8[8192]{0}', space=vmem, size = 0x2000, scoped, tag = 'input window, operand 0, single buffered']
    #allocation3 [shape = 's32[1]{0}', space=sflag, size = 0x4, scoped, tag = 'scoped memory for tpu_custom_call.1']
    #allocation4 [shape = 's32[1]{0}', space=sflag, size = 0x4, scoped, tag = 'scoped memory for tpu_custom_call.1']
    #allocation5 [shape = 'u8[8192]{0}', space=vmem, size = 0x2000, scoped, tag = 'input window, operand 1, single buffered']
    #allocation6 [shape = 's32[1]{0}', space=sflag, size = 0x4, scoped, tag = 'scoped memory for tpu_custom_call.1']
    #allocation7 [shape = 'u8[8192]{0}', space=vmem, size = 0x2000, scoped, tag = 'output window, operand 0, single buffered']
    %7 = vsyncpa [#allocation3], 0
    %8 = vsyncpa [#allocation6], 0
    %9 = vsyncpa [#allocation4], 0
    // Predicated region
    $region2: #{tpu_custom_call.1} parent=1 // pred_check
      _
    $region3: #{tpu_custom_call.1} parent=1 // pred_check_branch
      %11 = sbr.rel (0) target = $region5
    $region4: #{tpu_custom_call.1} parent=1 // pred_region
      %s13 = ssub.s32 256, 256
      %14 = vsyncadd [#allocation3], %s13
      %s15 = sshll.u32 [#allocation2], 4
      %s16 = int_to_ptr.vmem [resolvable:$true] %s15
      %21 = dma.hbm_to_vmem [thread:$0]  %s0, 256, %s16, [#allocation3], 128, 128, 8
    $region5: #{tpu_custom_call.1} parent=1 // pred_fallthru
      _
    // Predicated region
    $region6: #{tpu_custom_call.1} parent=1 // pred_check
      _
    $region7: #{tpu_custom_call.1} parent=1 // pred_check_branch
      %23 = sbr.rel (0) target = $region9
    $region8: #{tpu_custom_call.1} parent=1 // pred_region
      %s25 = ssub.s32 256, 256
      %26 = vsyncadd [#allocation6], %s25
      %s27 = sshll.u32 [#allocation5], 4
      %s28 = int_to_ptr.vmem [resolvable:$true] %s27
      %33 = dma.hbm_to_vmem [thread:$0]  %s1, 256, %s28, [#allocation6], 128, 128, 8
    $region9: #{tpu_custom_call.1} parent=1 // pred_fallthru
      _
    // Predicated region
    $region10: #{tpu_custom_call.1} parent=1 // pred_check
      _
    $region11: #{tpu_custom_call.1} parent=1 // pred_check_branch
      %35 = sbr.rel (0) target = $region13
    $region12: #{tpu_custom_call.1} parent=1 // pred_region
      %36 = dma.done [#allocation3], 256
    $region13: #{tpu_custom_call.1} parent=1 // pred_fallthru
      _
    // Predicated region
    $region14: #{tpu_custom_call.1} parent=1 // pred_check
      _
    $region15: #{tpu_custom_call.1} parent=1 // pred_check_branch
      %38 = sbr.rel (0) target = $region17
    $region16: #{tpu_custom_call.1} parent=1 // pred_region
      %39 = dma.done [#allocation6], 256
    $region17: #{tpu_custom_call.1} parent=1 // pred_fallthru
      _
    %v40 = vld [vmem:[#allocation2] sm:$0xff]
    %v41 = vld [vmem:[#allocation2 + $0x8] sm:$0xff]
    %v42 = vld [vmem:[#allocation5] sm:$0xff]
    %v43 = vld [vmem:[#allocation5 + $0x8] sm:$0xff]
    %v44 = vand.u32 2147483647, %v40
    %v45 = vand.u32 2147483647, %v41
    %v46 = vsub.f32 0.0, %v44
    %v47 = vsub.f32 0.0, %v45
    %v48 = vmul.f32 %v46, 1.442695
    %v49 = vpow.pop %v48
    %v50 = vmul.f32 %v47, 1.442695
    %v51 = vpow.pop %v50
    %v52 = vmax.f32 %v40, 0.0
    %v53 = vmax.f32 %v41, 0.0
    %v54 = vmul.f32 %v40, %v42
    %v55 = vmul.f32 %v41, %v43
    %v56 = vsub.f32 %v52, %v54
    %v57 = vsub.f32 %v53, %v55
    %v58 = vadd.f32 %v49, 1.0
    %v59 = vlog2.pop %v58
    %v60 = vmul.f32 %v59, 0.6931472
    %v61 = vmul.f32 -0.5, %v49
    %v62 = vadd.f32 %v61, 1.0
    %v63 = vmul.f32 %v62, %v49
    %v64 = vand.u32 2147483647, %v49
    %vm65 = vcmp.lt.f32.partialorder %v64, 0.0004427343
    %v66 = vsel %vm65, %v63, %v60
    %v67 = vadd.f32 %v51, 1.0
    %v68 = vlog2.pop %v67
    %v69 = vmul.f32 %v68, 0.6931472
    %v70 = vmul.f32 -0.5, %v51
    %v71 = vadd.f32 %v70, 1.0
    %v72 = vmul.f32 %v71, %v51
    %v73 = vand.u32 2147483647, %v51
    %vm74 = vcmp.lt.f32.partialorder %v73, 0.0004427343
    %v75 = vsel %vm74, %v72, %v69
    %v76 = vadd.f32 %v56, %v66
    %v77 = vadd.f32 %v57, %v75
    %v78 = vadd.f32 %v49, 1.0
    %v79 = vadd.f32 %v51, 1.0
    %v80 = vrcp.pop %v78
    %v81 = vrcp.pop %v79
    %vm82 = vcmp.ge.f32.partialorder %v40, 0.0
    %vm83 = vcmp.ge.f32.partialorder %v41, 0.0
    %v84 = vmul.f32 %v49, %v80
    %v85 = vmul.f32 %v51, %v81
    %v86 = vsel %vm82, %v80, %v84
    %v87 = vsel %vm83, %v81, %v85
    %88 = vadd.xlane.f32.xlu0 %v76
    %v89 = vpop.xlane.xlu0 %88
    %90 = vadd.xlane.f32.xlu0 %v77
    %v91 = vpop.xlane.xlu0 %90
    %v92 = vadd.f32 %v89, %v91
    %v93 = vrot.slane %v92, 4
    %v94 = vadd.f32 %v92, %v93
    %v95 = vrot.slane %v94, 2
    %v96 = vadd.f32 %v94, %v95
    %v97 = vrot.slane %v96, 1
    %v98 = vadd.f32 %v96, %v97
    %v99 = vmul.f32 %v98, 0.00048828125
    %v100 = vsub.f32 %v42, %v86
    %v101 = vsub.f32 %v43, %v87
    %v102 = vmul.f32 %v100, %v100
    %v103 = vmul.f32 %v101, %v101
    %v104 = vmul.f32 %v99, %v102
    %v105 = vmul.f32 %v99, %v103
    %106 = vst [vmem:[#allocation7] sm:$0xff] %v104
    %107 = vst [vmem:[#allocation7 + $0x8] sm:$0xff] %v105
    // Predicated region
    $region18: #{tpu_custom_call.1} parent=1 // pred_check
      _
    $region19: #{tpu_custom_call.1} parent=1 // pred_check_branch
      %109 = sbr.rel (0) target = $region21
    $region20: #{tpu_custom_call.1} parent=1 // pred_region
      %s111 = ssub.s32 256, 256
      %112 = vsyncadd [#allocation4], %s111
      %s113 = sshll.u32 [#allocation7], 4
      %s114 = int_to_ptr.vmem [resolvable:$true] %s113
      %119 = dma.vmem_to_hbm [thread:$0]  %s114, 256, %s2, [#allocation4], 128, 128, 8
    $region21: #{tpu_custom_call.1} parent=1 // pred_fallthru
      _
    // Predicated region
    $region22: #{tpu_custom_call.1} parent=1 // pred_check
      _
    $region23: #{tpu_custom_call.1} parent=1 // pred_check_branch
      %121 = sbr.rel (0) target = $region25
    $region24: #{tpu_custom_call.1} parent=1 // pred_region
      %122 = dma.done [#allocation4], 256
    $region25: #{tpu_custom_call.1} parent=1 // pred_fallthru
      _
    %123 = vsyncpa [#allocation3], 1
    %124 = vsyncpa [#allocation6], 1
    %125 = vsyncpa [#allocation4], 1

</llo_original>
